<compile_context>
chip_gen: v7x
topology: tpu7x:2x2x1
jax: 0.10.0
libtpu: 0.0.40
codegen_flags: <defaults>
</compile_context>

<pallas_src>
import functools
import math

import jax
import jax.numpy as jnp
from jax.experimental import pallas as pl
from jax.experimental.pallas import tpu as pltpu

# Model hyper-parameters (input_size comes from a CSV in the original script;
# fixed to a small deterministic value consistent with a tabular dataset).
INPUT_SIZE = 10
HIDDEN_SIZE1 = 16
HIDDEN_SIZE2 = 8
OUTPUT_SIZE = 1
BATCH = 8

LANE = 128  # vreg lane width; feature dims of the packed params are padded to it


def _round_up(a, m):
    return -(-a // m) * m


def mlp_kernel(x_ref, w_ref, b_ref, o_ref):
    """Fused fc1->ReLU->fc2->ReLU->fc3->Sigmoid on one (TB, INPUT_SIZE) row tile.

    x_ref : [TB, INPUT_SIZE] f32   raw, unpadded features (streamed)
    w_ref : [3, 128, 128]    bf16  zero-padded, layer-stacked weights (resident)
    b_ref : [3, 1, 128]      f32   zero-padded, layer-stacked biases  (resident)
    o_ref : [TB//128, 128]   f32   packed output: o[g, j] = sigmoid(fc3(x[g*128+j]))
    """
    # bf16 cast happens in-kernel (no padded input slab in HBM).
    x = x_ref[...].astype(jnp.bfloat16)                        # [TB, F]

    # fc1 + ReLU: K = INPUT_SIZE matmul against a static slice of the slab.
    h = jnp.dot(x, w_ref[0][:INPUT_SIZE, :],
                preferred_element_type=jnp.float32) + b_ref[0]
    h = jnp.maximum(h, 0.0)

    # fc2 + ReLU (padded lanes stay exactly 0 through bias add + ReLU).
    h = jnp.dot(h.astype(jnp.bfloat16), w_ref[1],
                preferred_element_type=jnp.float32) + b_ref[1]
    h = jnp.maximum(h, 0.0)

    # fc3: only column 0 is real (padded w3/b3 columns are 0 -> cols 1.. are 0).
    z = jnp.dot(h.astype(jnp.bfloat16), w_ref[2],
                preferred_element_type=jnp.float32) + b_ref[2]  # [TB, 128]

    # Pack column 0 of each 128-row group into a lane-dense row:
    # split the sublane dim (layout-trivial), XLU-transpose the minor dims
    # (XLU slot is idle in this kernel), then slice row 0.
    tb = z.shape[0]
    zt = jnp.swapaxes(z.reshape(tb // LANE, LANE, LANE), 1, 2)  # [G, 128, 128]
    logit = zt[:, 0, :]                                         # [G, 128]

    # Sigmoid only on the packed (real) logits: EUP exp + approx reciprocal.
    o_ref[...] = pl.reciprocal(1.0 + jnp.exp(-logit), approx=True)


def _pad2(a, rows, cols):
    """Zero-pad a 2-D array up to (rows, cols). Padding MUST stay exactly zero."""
    out = jnp.zeros((rows, cols), a.dtype)
    return out.at[: a.shape[0], : a.shape[1]].set(a)


def pack_params(params):
    """Stack zero-padded weights/biases into two lane-dense slabs (2 DMAs, not 6)."""
    w1, b1, w2, b2, w3, b3 = params
    w = jnp.stack([_pad2(w1, LANE, LANE),
                   _pad2(w2, LANE, LANE),
                   _pad2(w3, LANE, LANE)]).astype(jnp.bfloat16)   # [3, 128, 128]
    b = jnp.stack([_pad2(b1, 1, LANE),
                   _pad2(b2, 1, LANE),
                   _pad2(b3, 1, LANE)]).astype(jnp.float32)       # [3, 1, 128]
    return w, b


@functools.partial(jax.jit, static_argnames=("tb",))
def mlp_forward(x, w_packed, b_packed, *, tb=2048):
    B, F = x.shape
    assert F == INPUT_SIZE, "kernel is specialized on INPUT_SIZE"

    # Row tiling: multiples of 128 (packed output rows) and, for large batches,
    # multiples of 1024 with >= 2 grid steps so the "parallel" batch axis can
    # shard across TensorCores (v7x megacore). Per-step overhead ~0.35 us is
    # amortized by the 2048-row default tile (v6e can push this higher).
    b128 = _round_up(B, LANE)
    if b128 < 2 * 1024:
        tb_eff = b128                                   # single grid step
    else:
        tb_eff = max(1024, min(_round_up(tb, 1024),
                               _round_up(pl.cdiv(b128, 2), 1024)))
    b_pad = _round_up(b128, tb_eff)

    if b_pad != B:  # pad batch rows only (cheap: 40 B/row), never the feature dim
        x = jnp.concatenate([x, jnp.zeros((b_pad - B, F), x.dtype)], axis=0)

    out = pl.pallas_call(
        mlp_kernel,
        out_shape=jax.ShapeDtypeStruct((b_pad // LANE, LANE), jnp.float32),
        grid=(b_pad // tb_eff,),
        in_specs=[
            pl.BlockSpec((tb_eff, F), lambda i: (i, 0)),          # stream raw rows
            pl.BlockSpec((3, LANE, LANE), lambda i: (0, 0, 0)),   # weights resident
            pl.BlockSpec((3, 1, LANE), lambda i: (0, 0, 0)),      # biases resident
        ],
        out_specs=pl.BlockSpec((tb_eff // LANE, LANE), lambda i: (i, 0)),
        compiler_params=pltpu.CompilerParams(
            dimension_semantics=("parallel",),   # shard batch axis over TCs (v7x)
            # no vmem_limit_bytes: working set is a few MiB, defaults are fine
        ),
    )(x, w_packed, b_packed)

    # Unpack: out[g, j] is the prediction for (global) row g*128 + j.
    return out.reshape(-1)[:B].reshape(B, OUTPUT_SIZE)


def init_linear(key, fan_in, fan_out):
    """Deterministic init mimicking torch.nn.Linear default U(-1/sqrt(fan_in), ..)."""
    kw, kb = jax.random.split(key)
    bound = 1.0 / math.sqrt(fan_in)
    w = jax.random.uniform(kw, (fan_in, fan_out), jnp.float32, -bound, bound)
    b = jax.random.uniform(kb, (1, fan_out), jnp.float32, -bound, bound)
    return w, b


if __name__ == "__main__":
    key = jax.random.PRNGKey(0)
    kx, k1, k2, k3 = jax.random.split(key, 4)

    x = jax.random.normal(kx, (BATCH, INPUT_SIZE), jnp.float32)

    w1, b1 = init_linear(k1, INPUT_SIZE, HIDDEN_SIZE1)
    w2, b2 = init_linear(k2, HIDDEN_SIZE1, HIDDEN_SIZE2)
    w3, b3 = init_linear(k3, HIDDEN_SIZE2, OUTPUT_SIZE)
    params = (w1, b1, w2, b2, w3, b3)

    w_packed, b_packed = pack_params(params)

    out = mlp_forward(x, w_packed, b_packed)
    jax.block_until_ready(out)

    # Reference in plain f32 JAX (same math as the PyTorch forward).
    ref = jnp.maximum(x @ w1 + b1, 0.0)
    ref = jnp.maximum(ref @ w2 + b2, 0.0)
    ref = jax.nn.sigmoid(ref @ w3 + b3)

    assert out.shape == (BATCH, OUTPUT_SIZE)
    # bf16 matmuls + approx EUP reciprocal; output itself stays f32.
    assert jnp.allclose(out, ref, atol=1e-2, rtol=0.0), float(
        jnp.max(jnp.abs(out - ref)))

    print("KERNEL_OK")
</pallas_src>

<mosaic_0001>
module attributes {stable_mosaic.version = 11 : i64} {
  func.func @mlp_kernel(%arg0: i32, %arg1: memref<128x10xf32, #tpu.memory_space<vmem>>, %arg2: memref<3x128x128xbf16, #tpu.memory_space<vmem>>, %arg3: memref<3x1x128xf32, #tpu.memory_space<vmem>>, %arg4: memref<1x128xf32, #tpu.memory_space<vmem>>) attributes {dimension_semantics = [#tpu.dimension_semantics<parallel>], iteration_bounds = array<i64: 1>, scalar_prefetch = 0 : i64, scratch_operands = 0 : i64, tpu.core_type = #tpu.core_type<tc>, window_params = [{transform_indices = @transform_0, window_bounds = array<i64: 128, 10>}, {pipeline_mode = #tpu.pipeline_mode<synchronous>, transform_indices = @transform_1, window_bounds = array<i64: 3, 128, 128>}, {pipeline_mode = #tpu.pipeline_mode<synchronous>, transform_indices = @transform_2, window_bounds = array<i64: 3, 1, 128>}, {transform_indices = @transform_3, window_bounds = array<i64: 1, 128>}]} {
    %c0 = arith.constant 0 : index
    %c0_0 = arith.constant 0 : index
    %0 = vector.load %arg1[%c0, %c0_0] : memref<128x10xf32, #tpu.memory_space<vmem>>, vector<128x10xf32>
    %1 = arith.truncf %0 : vector<128x10xf32> to vector<128x10xbf16>
    %c0_1 = arith.constant 0 : index
    %c0_2 = arith.constant 0 : index
    %c0_3 = arith.constant 0 : index
    %2 = vector.load %arg2[%c0_1, %c0_2, %c0_3] : memref<3x128x128xbf16, #tpu.memory_space<vmem>>, vector<1x128x128xbf16>
    %3 = vector.shape_cast %2 : vector<1x128x128xbf16> to vector<128x128xbf16>
    %4 = vector.extract_strided_slice %3 {offsets = [0, 0], sizes = [10, 128], strides = [1, 1]} : vector<128x128xbf16> to vector<10x128xbf16>
    %cst = arith.constant dense<0.000000e+00> : vector<128x128xf32>
    %5 = tpu.matmul %1, %4, %cst {dimension_numbers = #tpu.dot_dimension_numbers<[1], [0], [0], [1], [0, 0, 1, 1], [], []>} : vector<128x10xbf16>, vector<10x128xbf16>, vector<128x128xf32> -> vector<128x128xf32>
    %c0_4 = arith.constant 0 : index
    %c0_5 = arith.constant 0 : index
    %c0_6 = arith.constant 0 : index
    %6 = vector.load %arg3[%c0_4, %c0_5, %c0_6] : memref<3x1x128xf32, #tpu.memory_space<vmem>>, vector<1x1x128xf32>
    %7 = vector.shape_cast %6 : vector<1x1x128xf32> to vector<1x128xf32>
    %8 = vector.broadcast %7 : vector<1x128xf32> to vector<128x128xf32>
    %9 = arith.addf %5, %8 : vector<128x128xf32>
    %cst_7 = arith.constant 0.000000e+00 : f32
    %10 = vector.broadcast %cst_7 : f32 to vector<128x128xf32>
    %11 = arith.maximumf %9, %10 : vector<128x128xf32>
    %12 = arith.truncf %11 : vector<128x128xf32> to vector<128x128xbf16>
    %c1 = arith.constant 1 : index
    %c0_8 = arith.constant 0 : index
    %c0_9 = arith.constant 0 : index
    %13 = vector.load %arg2[%c1, %c0_8, %c0_9] : memref<3x128x128xbf16, #tpu.memory_space<vmem>>, vector<1x128x128xbf16>
    %14 = vector.shape_cast %13 : vector<1x128x128xbf16> to vector<128x128xbf16>
    %cst_10 = arith.constant dense<0.000000e+00> : vector<128x128xf32>
    %15 = tpu.matmul %12, %14, %cst_10 {dimension_numbers = #tpu.dot_dimension_numbers<[1], [0], [0], [1], [0, 0, 1, 1], [], []>} : vector<128x128xbf16>, vector<128x128xbf16>, vector<128x128xf32> -> vector<128x128xf32>
    %c1_11 = arith.constant 1 : index
    %c0_12 = arith.constant 0 : index
    %c0_13 = arith.constant 0 : index
    %16 = vector.load %arg3[%c1_11, %c0_12, %c0_13] : memref<3x1x128xf32, #tpu.memory_space<vmem>>, vector<1x1x128xf32>
    %17 = vector.shape_cast %16 : vector<1x1x128xf32> to vector<1x128xf32>
    %18 = vector.broadcast %17 : vector<1x128xf32> to vector<128x128xf32>
    %19 = arith.addf %15, %18 : vector<128x128xf32>
    %cst_14 = arith.constant 0.000000e+00 : f32
    %20 = vector.broadcast %cst_14 : f32 to vector<128x128xf32>
    %21 = arith.maximumf %19, %20 : vector<128x128xf32>
    %22 = arith.truncf %21 : vector<128x128xf32> to vector<128x128xbf16>
    %c2 = arith.constant 2 : index
    %c0_15 = arith.constant 0 : index
    %c0_16 = arith.constant 0 : index
    %23 = vector.load %arg2[%c2, %c0_15, %c0_16] : memref<3x128x128xbf16, #tpu.memory_space<vmem>>, vector<1x128x128xbf16>
    %24 = vector.shape_cast %23 : vector<1x128x128xbf16> to vector<128x128xbf16>
    %cst_17 = arith.constant dense<0.000000e+00> : vector<128x128xf32>
    %25 = tpu.matmul %22, %24, %cst_17 {dimension_numbers = #tpu.dot_dimension_numbers<[1], [0], [0], [1], [0, 0, 1, 1], [], []>} : vector<128x128xbf16>, vector<128x128xbf16>, vector<128x128xf32> -> vector<128x128xf32>
    %c2_18 = arith.constant 2 : index
    %c0_19 = arith.constant 0 : index
    %c0_20 = arith.constant 0 : index
    %26 = vector.load %arg3[%c2_18, %c0_19, %c0_20] : memref<3x1x128xf32, #tpu.memory_space<vmem>>, vector<1x1x128xf32>
    %27 = vector.shape_cast %26 : vector<1x1x128xf32> to vector<1x128xf32>
    %28 = vector.broadcast %27 : vector<1x128xf32> to vector<128x128xf32>
    %29 = arith.addf %25, %28 : vector<128x128xf32>
    %30 = vector.shape_cast %29 : vector<128x128xf32> to vector<1x128x128xf32>
    %31 = tpu.transpose %30, [0, 2, 1] : vector<1x128x128xf32> -> vector<1x128x128xf32>
    %32 = vector.extract_strided_slice %31 {offsets = [0, 0, 0], sizes = [1, 1, 128], strides = [1, 1, 1]} : vector<1x128x128xf32> to vector<1x1x128xf32>
    %33 = vector.shape_cast %32 : vector<1x1x128xf32> to vector<1x128xf32>
    %cst_21 = arith.constant 0.000000e+00 : f32
    %34 = vector.broadcast %cst_21 : f32 to vector<1x128xf32>
    %35 = arith.subf %34, %33 : vector<1x128xf32>
    %36 = math.exp %35 : vector<1x128xf32>
    %cst_22 = arith.constant 1.000000e+00 : f32
    %37 = vector.broadcast %cst_22 : f32 to vector<1x128xf32>
    %38 = arith.addf %37, %36 : vector<1x128xf32>
    %39 = tpu.reciprocal %38 {approx = true} : vector<1x128xf32> -> vector<1x128xf32>
    %c0_23 = arith.constant 0 : index
    %c0_24 = arith.constant 0 : index
    %40 = vector.load %arg4[%c0_23, %c0_24] : memref<1x128xf32, #tpu.memory_space<vmem>>, vector<1x128xf32>
    tpu.vector_store %arg4[%c0_23, %c0_24], %39 {strides = array<i32>} : memref<1x128xf32, #tpu.memory_space<vmem>>, vector<1x128xf32>,
    return
  }
  func.func @transform_0(%arg0: i32) -> (i32, i32) {
    %c0_i32 = arith.constant 0 : i32
    %c0_i32_0 = arith.constant 0 : i32
    return %arg0, %c0_i32 : i32, i32
  }
  func.func @transform_1(%arg0: i32) -> (i32, i32, i32) {
    %c0_i32 = arith.constant 0 : i32
    %c0_i32_0 = arith.constant 0 : i32
    %c0_i32_1 = arith.constant 0 : i32
    %c0_i32_2 = arith.constant 0 : i32
    return %c0_i32, %c0_i32_0, %c0_i32_1 : i32, i32, i32
  }
  func.func @transform_2(%arg0: i32) -> (i32, i32, i32) {
    %c0_i32 = arith.constant 0 : i32
    %c0_i32_0 = arith.constant 0 : i32
    %c0_i32_1 = arith.constant 0 : i32
    %c0_i32_2 = arith.constant 0 : i32
    return %c0_i32, %c0_i32_0, %c0_i32_1 : i32, i32, i32
  }
  func.func @transform_3(%arg0: i32) -> (i32, i32) {
    %c0_i32 = arith.constant 0 : i32
    %c0_i32_0 = arith.constant 0 : i32
    return %arg0, %c0_i32 : i32, i32
  }
}

</mosaic_0001>

<llo_original>
// kernel: mlp_forward.1
$region0: #{mlp_forward.1}
  #allocation0 [shape = 'u32[]', space=smem, size = 0x4, offset = 0x4, fixed_abs, tag = 'smem constant byte address 0x4 - core index']
  #allocation1 [shape = 'u32[144,128]{1,0:T(1,128)}', space=vmem, size = 0x12000, scoped, tag = 'internal scratch']
  %s0 = inlined_call_operand.vmem [shape: f32[128,10], index: 0, kind: input, shape index: {}]
  %s1 = inlined_call_operand.hbm [shape: bf16[3,128,128], index: 1, kind: input, shape index: {}]
  %s2 = inlined_call_operand.vmem [shape: f32[3,1,128], index: 2, kind: input, shape index: {}]
  %s3 = inlined_call_operand.vmem [shape: f32[1,128], index: 3, kind: output, shape index: {}]
  %s4 = sld [smem:[#allocation0]]
  $region26: #{mlp_forward.1} parent=0
    _
  %s6 = ssub.s32 1, %s4
  %s7 = scalar_select 0, %s6, %s4
  $region1: #{mlp_forward.1} parent=0
    #allocation2 [shape = 'u8[98304]{0}', space=vmem, size = 0x18000, scoped, tag = 'input window, operand 1, single buffered']
    #allocation3 [shape = 's32[1]{0}', space=sflag, size = 0x4, scoped, tag = 'scoped memory for mlp_forward.1']
    %8 = vsyncpa [#allocation3], 0
    // Predicated region
    $region2: #{mlp_forward.1} parent=1 // pred_check
      _
    $region3: #{mlp_forward.1} parent=1 // pred_check_branch
      %10 = sbr.rel (0) target = $region5
    $region4: #{mlp_forward.1} parent=1 // pred_region
      _
    $region5: #{mlp_forward.1} parent=1 // pred_fallthru
      _
    // Predicated region
    $region6: #{mlp_forward.1} parent=1 // pred_check
      _
    $region7: #{mlp_forward.1} parent=1 // pred_check_branch
      %12 = sbr.rel (0) target = $region9
    $region8: #{mlp_forward.1} parent=1 // pred_region
      %s14 = ssub.s32 3072, 3072
      %15 = vsyncadd [#allocation3], %s14
      %s16 = sshll.u32 [#allocation2], 4
      %s17 = int_to_ptr.vmem [resolvable:$true] %s16
      %22 = dma.hbm_to_vmem [thread:$0]  %s1, 3072, %s17, [#allocation3], 64, 64, 4
    $region9: #{mlp_forward.1} parent=1 // pred_fallthru
      _
    // Predicated region
    $region10: #{mlp_forward.1} parent=1 // pred_check
      _
    $region11: #{mlp_forward.1} parent=1 // pred_check_branch
      %24 = sbr.rel (0) target = $region13
    $region12: #{mlp_forward.1} parent=1 // pred_region
      _
    $region13: #{mlp_forward.1} parent=1 // pred_fallthru
      _
    // Predicated region
    $region14: #{mlp_forward.1} parent=1 // pred_check
      _
    $region15: #{mlp_forward.1} parent=1 // pred_check_branch
      %26 = sbr.rel (0) target = $region17
    $region16: #{mlp_forward.1} parent=1 // pred_region
      %27 = dma.done [#allocation3], 3072
    $region17: #{mlp_forward.1} parent=1 // pred_fallthru
      _
    %v29 = vld [vmem:[%s0] sm:$0xff]
    %v30 = vld [vmem:[%s0 + $0x8] sm:$0xff]
    %v31 = vld [vmem:[%s0 + $0x10] sm:$0xff]
    %v32 = vld [vmem:[%s0 + $0x18] sm:$0xff]
    %v33 = vld [vmem:[%s0 + $0x20] sm:$0xff]
    %v34 = vld [vmem:[%s0 + $0x28] sm:$0xff]
    %v35 = vld [vmem:[%s0 + $0x30] sm:$0xff]
    %v36 = vld [vmem:[%s0 + $0x38] sm:$0xff]
    %v37 = vld [vmem:[%s0 + $0x40] sm:$0xff]
    %v38 = vld [vmem:[%s0 + $0x48] sm:$0xff]
    %v39 = vld [vmem:[%s0 + $0x50] sm:$0xff]
    %v40 = vld [vmem:[%s0 + $0x58] sm:$0xff]
    %v41 = vld [vmem:[%s0 + $0x60] sm:$0xff]
    %v42 = vld [vmem:[%s0 + $0x68] sm:$0xff]
    %v43 = vld [vmem:[%s0 + $0x70] sm:$0xff]
    %v44 = vld [vmem:[%s0 + $0x78] sm:$0xff]
    %v45 = vpack.c.bf16 %v30, %v29
    %v46 = vpack.c.bf16 %v32, %v31
    %v47 = vpack.c.bf16 %v34, %v33
    %v48 = vpack.c.bf16 %v36, %v35
    %v49 = vpack.c.bf16 %v38, %v37
    %v50 = vpack.c.bf16 %v40, %v39
    %v51 = vpack.c.bf16 %v42, %v41
    %v52 = vpack.c.bf16 %v44, %v43
    %v53 = vld [vmem:[#allocation2] sm:$0xf]
    %v54 = vld [vmem:[#allocation2 + $0x4] sm:$0xf]
    %v55 = vld [vmem:[%s2] sm:$0x1]
    %v57 = vlaneseq
    %v58 = vshrl.u32 %v57, 7
    %v59 = vsub.s32 0, %v58
    %v60 = vrot.slane %v55, %v59
    %v64 = vunpack.c.l.b16 %v53
    %v65 = vunpack.c.l.b16 %v54
    %v66 = vpack.c.b16 %v65, %v64
    %vm67 = vcmask 80896
    %v69 = vsel %vm67, %v45, 0
    %v72 = vsel %vm67, %v46, 0
    %v75 = vsel %vm67, %v47, 0
    %v78 = vsel %vm67, %v48, 0
    %v81 = vsel %vm67, %v49, 0
    %v84 = vsel %vm67, %v50, 0
    %v87 = vsel %vm67, %v51, 0
    %v90 = vsel %vm67, %v52, 0
    %vm92 = vcmask 1044480
    %v94 = vsel %vm92, %v66, 0
    %96 = vmatprep.subr.bf16.mxu0 0
    %97 = vmatpush1.bf16.msra.mxu0 %v94
    %98 = vmatprep.subr.bf16.mxu0 0
    %99 = vmatpush1.bf16.msra.mxu0 0
    %100 = vmatprep.subr.bf16.mxu0 0
    %101 = vmatpush1.bf16.msra.mxu0 0
    %102 = vmatprep.subr.bf16.mxu0 0
    %103 = vmatpush1.bf16.msra.mxu0 0
    %104 = vmatprep.subr.bf16.mxu0 0
    %105 = vmatpush1.bf16.msra.mxu0 0
    %106 = vmatprep.subr.bf16.mxu0 0
    %107 = vmatpush1.bf16.msra.mxu0 0
    %108 = vmatprep.subr.bf16.mxu0 0
    %109 = vmatpush1.bf16.msra.mxu0 0
    %110 = vmatprep.subr.bf16.mxu0 0
    %111 = vmatpush1.bf16.msra.mxu0 0
    %112 = vmatprep.subr.bf16.mxu0 0
    %113 = vmatpush1.bf16.msra.mxu0 0
    %114 = vmatprep.subr.bf16.mxu0 0
    %115 = vmatpush1.bf16.msra.mxu0 0
    %116 = vmatprep.subr.bf16.mxu0 0
    %117 = vmatpush1.bf16.msra.mxu0 0
    %118 = vmatprep.subr.bf16.mxu0 0
    %119 = vmatpush1.bf16.msra.mxu0 0
    %120 = vmatprep.subr.bf16.mxu0 0
    %121 = vmatpush1.bf16.msra.mxu0 0
    %122 = vmatprep.subr.bf16.mxu0 0
    %123 = vmatpush1.bf16.msra.mxu0 0
    %124 = vmatprep.subr.bf16.mxu0 0
    %125 = vmatpush1.bf16.msra.mxu0 0
    %126 = vmatprep.subr.bf16.mxu0 0
    %127 = vmatpush1.bf16.msra.mxu0 0
    %128 = vmatprep.mubr.bf16.mxu0 0
    %129 = vmatmul.mubr.bf16.gmra.mrb[0].mxu0 %v69
    %v130 = vpop.f32.mrb[0].mxu0
    %v131 = vadd.f32 %v60, %v130
    %v132 = vpop.f32.mrb[0].mxu0
    %v133 = vpop.f32.mrb[0].mxu0
    %v134 = vadd.f32 %v60, %v133
    %v135 = vpop.f32.mrb[0].mxu0
    %136 = vmatprep.mubr.bf16.mxu0 0
    %137 = vmatmul.mubr.bf16.gmra.mrb[0].mxu0 %v72
    %v138 = vpop.f32.mrb[0].mxu0
    %v139 = vadd.f32 %v60, %v138
    %v140 = vpop.f32.mrb[0].mxu0
    %v141 = vpop.f32.mrb[0].mxu0
    %v142 = vadd.f32 %v60, %v141
    %v143 = vpop.f32.mrb[0].mxu0
    %144 = vmatprep.mubr.bf16.mxu0 0
    %145 = vmatmul.mubr.bf16.gmra.mrb[0].mxu0 %v75
    %v146 = vpop.f32.mrb[0].mxu0
    %v147 = vadd.f32 %v60, %v146
    %v148 = vpop.f32.mrb[0].mxu0
    %v149 = vpop.f32.mrb[0].mxu0
    %v150 = vadd.f32 %v60, %v149
    %v151 = vpop.f32.mrb[0].mxu0
    %152 = vmatprep.mubr.bf16.mxu0 0
    %153 = vmatmul.mubr.bf16.gmra.mrb[0].mxu0 %v78
    %v154 = vpop.f32.mrb[0].mxu0
    %v155 = vadd.f32 %v60, %v154
    %v156 = vpop.f32.mrb[0].mxu0
    %v157 = vpop.f32.mrb[0].mxu0
    %v158 = vadd.f32 %v60, %v157
    %v159 = vpop.f32.mrb[0].mxu0
    %160 = vmatprep.mubr.bf16.mxu0 0
    %161 = vmatmul.mubr.bf16.gmra.mrb[0].mxu0 %v81
    %v162 = vpop.f32.mrb[0].mxu0
    %v163 = vadd.f32 %v60, %v162
    %v164 = vpop.f32.mrb[0].mxu0
    %v165 = vpop.f32.mrb[0].mxu0
    %v166 = vadd.f32 %v60, %v165
    %v167 = vpop.f32.mrb[0].mxu0
    %168 = vmatprep.mubr.bf16.mxu0 0
    %169 = vmatmul.mubr.bf16.gmra.mrb[0].mxu0 %v84
    %v170 = vpop.f32.mrb[0].mxu0
    %v171 = vadd.f32 %v60, %v170
    %v172 = vpop.f32.mrb[0].mxu0
    %v173 = vpop.f32.mrb[0].mxu0
    %v174 = vadd.f32 %v60, %v173
    %v175 = vpop.f32.mrb[0].mxu0
    %176 = vmatprep.mubr.bf16.mxu0 0
    %177 = vmatmul.mubr.bf16.gmra.mrb[0].mxu0 %v87
    %v178 = vpop.f32.mrb[0].mxu0
    %v179 = vadd.f32 %v60, %v178
    %v180 = vpop.f32.mrb[0].mxu0
    %v181 = vpop.f32.mrb[0].mxu0
    %v182 = vadd.f32 %v60, %v181
    %v183 = vpop.f32.mrb[0].mxu0
    %184 = vmatprep.mubr.bf16.mxu0 0
    %185 = vmatmul.mubr.bf16.gmra.mrb[0].mxu0 %v90
    %v186 = vpop.f32.mrb[0].mxu0
    %v187 = vadd.f32 %v60, %v186
    %v188 = vpop.f32.mrb[0].mxu0
    %v189 = vpop.f32.mrb[0].mxu0
    %v190 = vadd.f32 %v60, %v189
    %v191 = vpop.f32.mrb[0].mxu0
    %192 = vdwg.mxu0
    %v193 = vmax.f32 %v131, 0.0
    %v194 = vmax.f32 %v134, 0.0
    %v195 = vmax.f32 %v139, 0.0
    %v196 = vmax.f32 %v142, 0.0
    %v197 = vmax.f32 %v147, 0.0
    %v198 = vmax.f32 %v150, 0.0
    %v199 = vmax.f32 %v155, 0.0
    %v200 = vmax.f32 %v158, 0.0
    %v201 = vmax.f32 %v163, 0.0
    %v202 = vmax.f32 %v166, 0.0
    %v203 = vmax.f32 %v171, 0.0
    %v204 = vmax.f32 %v174, 0.0
    %v205 = vmax.f32 %v179, 0.0
    %v206 = vmax.f32 %v182, 0.0
    %v207 = vmax.f32 %v187, 0.0
    %v208 = vmax.f32 %v190, 0.0
    %v209 = vpack.c.bf16 %v194, %v193
    %v210 = vpack.c.bf16 %v196, %v195
    %v211 = vpack.c.bf16 %v198, %v197
    %v212 = vpack.c.bf16 %v200, %v199
    %v213 = vpack.c.bf16 %v202, %v201
    %v214 = vpack.c.bf16 %v204, %v203
    %v215 = vpack.c.bf16 %v206, %v205
    %v216 = vpack.c.bf16 %v208, %v207
    %s217 = scalar_lea.vmem [#allocation2], 64
    %v218 = vld [vmem:[%s217] sm:$0xf]
    %v219 = vld [vmem:[%s217 + $0x4] sm:$0xf]
    %v220 = vld [vmem:[%s217 + $0x8] sm:$0xf]
    %v221 = vld [vmem:[%s217 + $0xc] sm:$0xf]
    %v222 = vld [vmem:[%s217 + $0x10] sm:$0xf]
    %v223 = vld [vmem:[%s217 + $0x14] sm:$0xf]
    %v224 = vld [vmem:[%s217 + $0x18] sm:$0xf]
    %v225 = vld [vmem:[%s217 + $0x1c] sm:$0xf]
    %v226 = vld [vmem:[%s217 + $0x20] sm:$0xf]
    %v227 = vld [vmem:[%s217 + $0x24] sm:$0xf]
    %v228 = vld [vmem:[%s217 + $0x28] sm:$0xf]
    %v229 = vld [vmem:[%s217 + $0x2c] sm:$0xf]
    %v230 = vld [vmem:[%s217 + $0x30] sm:$0xf]
    %v231 = vld [vmem:[%s217 + $0x34] sm:$0xf]
    %v232 = vld [vmem:[%s217 + $0x38] sm:$0xf]
    %v233 = vld [vmem:[%s217 + $0x3c] sm:$0xf]
    %s234 = scalar_lea.vmem %s2, 1
    %v235 = vld [vmem:[%s234] sm:$0x1]
    %v237 = vlaneseq
    %v238 = vshrl.u32 %v237, 7
    %v239 = vsub.s32 0, %v238
    %v240 = vrot.slane %v235, %v239
    %v258 = vunpack.c.l.b16 %v218
    %v259 = vunpack.c.l.b16 %v219
    %v260 = vunpack.c.l.b16 %v220
    %v261 = vunpack.c.l.b16 %v221
    %v262 = vunpack.c.l.b16 %v222
    %v263 = vunpack.c.l.b16 %v223
    %v264 = vunpack.c.l.b16 %v224
    %v265 = vunpack.c.l.b16 %v225
    %v266 = vunpack.c.l.b16 %v226
    %v267 = vunpack.c.l.b16 %v227
    %v268 = vunpack.c.l.b16 %v228
    %v269 = vunpack.c.l.b16 %v229
    %v270 = vunpack.c.l.b16 %v230
    %v271 = vunpack.c.l.b16 %v231
    %v272 = vunpack.c.l.b16 %v232
    %v273 = vunpack.c.l.b16 %v233
    %v274 = vpack.c.b16 %v259, %v258
    %v275 = vpack.c.b16 %v261, %v260
    %v276 = vpack.c.b16 %v263, %v262
    %v277 = vpack.c.b16 %v265, %v264
    %v278 = vpack.c.b16 %v267, %v266
    %v279 = vpack.c.b16 %v269, %v268
    %v280 = vpack.c.b16 %v271, %v270
    %v281 = vpack.c.b16 %v273, %v272
    %290 = vmatprep.subr.bf16.mxu0 0
    %291 = vmatpush1.bf16.msra.mxu0 %v274
    %292 = vmatprep.subr.bf16.mxu0 0
    %293 = vmatpush1.bf16.msra.mxu0 %v275
    %294 = vmatprep.subr.bf16.mxu0 0
    %295 = vmatpush1.bf16.msra.mxu0 %v276
    %296 = vmatprep.subr.bf16.mxu0 0
    %297 = vmatpush1.bf16.msra.mxu0 %v277
    %298 = vmatprep.subr.bf16.mxu0 0
    %299 = vmatpush1.bf16.msra.mxu0 %v278
    %300 = vmatprep.subr.bf16.mxu0 0
    %301 = vmatpush1.bf16.msra.mxu0 %v279
    %302 = vmatprep.subr.bf16.mxu0 0
    %303 = vmatpush1.bf16.msra.mxu0 %v280
    %304 = vmatprep.subr.bf16.mxu0 0
    %305 = vmatpush1.bf16.msra.mxu0 %v281
    %306 = vmatprep.subr.bf16.mxu0 0
    %307 = vmatpush1.bf16.msra.mxu0 0
    %308 = vmatprep.subr.bf16.mxu0 0
    %309 = vmatpush1.bf16.msra.mxu0 0
    %310 = vmatprep.subr.bf16.mxu0 0
    %311 = vmatpush1.bf16.msra.mxu0 0
    %312 = vmatprep.subr.bf16.mxu0 0
    %313 = vmatpush1.bf16.msra.mxu0 0
    %314 = vmatprep.subr.bf16.mxu0 0
    %315 = vmatpush1.bf16.msra.mxu0 0
    %316 = vmatprep.subr.bf16.mxu0 0
    %317 = vmatpush1.bf16.msra.mxu0 0
    %318 = vmatprep.subr.bf16.mxu0 0
    %319 = vmatpush1.bf16.msra.mxu0 0
    %320 = vmatprep.subr.bf16.mxu0 0
    %321 = vmatpush1.bf16.msra.mxu0 0
    %322 = vmatprep.mubr.bf16.mxu0 0
    %323 = vmatmul.mubr.bf16.gmra.mrb[0].mxu0 %v209
    %v324 = vpop.f32.mrb[0].mxu0
    %v325 = vadd.f32 %v240, %v324
    %v326 = vpop.f32.mrb[0].mxu0
    %v327 = vpop.f32.mrb[0].mxu0
    %v328 = vadd.f32 %v240, %v327
    %v329 = vpop.f32.mrb[0].mxu0
    %330 = vmatprep.mubr.bf16.mxu0 0
    %331 = vmatmul.mubr.bf16.gmra.mrb[0].mxu0 %v210
    %v332 = vpop.f32.mrb[0].mxu0
    %v333 = vadd.f32 %v240, %v332
    %v334 = vpop.f32.mrb[0].mxu0
    %v335 = vpop.f32.mrb[0].mxu0
    %v336 = vadd.f32 %v240, %v335
    %v337 = vpop.f32.mrb[0].mxu0
    %338 = vmatprep.mubr.bf16.mxu0 0
    %339 = vmatmul.mubr.bf16.gmra.mrb[0].mxu0 %v211
    %v340 = vpop.f32.mrb[0].mxu0
    %v341 = vadd.f32 %v240, %v340
    %v342 = vpop.f32.mrb[0].mxu0
    %v343 = vpop.f32.mrb[0].mxu0
    %v344 = vadd.f32 %v240, %v343
    %v345 = vpop.f32.mrb[0].mxu0
    %346 = vmatprep.mubr.bf16.mxu0 0
    %347 = vmatmul.mubr.bf16.gmra.mrb[0].mxu0 %v212
    %v348 = vpop.f32.mrb[0].mxu0
    %v349 = vadd.f32 %v240, %v348
    %v350 = vpop.f32.mrb[0].mxu0
    %v351 = vpop.f32.mrb[0].mxu0
    %v352 = vadd.f32 %v240, %v351
    %v353 = vpop.f32.mrb[0].mxu0
    %354 = vmatprep.mubr.bf16.mxu0 0
    %355 = vmatmul.mubr.bf16.gmra.mrb[0].mxu0 %v213
    %v356 = vpop.f32.mrb[0].mxu0
    %v357 = vadd.f32 %v240, %v356
    %v358 = vpop.f32.mrb[0].mxu0
    %v359 = vpop.f32.mrb[0].mxu0
    %v360 = vadd.f32 %v240, %v359
    %v361 = vpop.f32.mrb[0].mxu0
    %362 = vmatprep.mubr.bf16.mxu0 0
    %363 = vmatmul.mubr.bf16.gmra.mrb[0].mxu0 %v214
    %v364 = vpop.f32.mrb[0].mxu0
    %v365 = vadd.f32 %v240, %v364
    %v366 = vpop.f32.mrb[0].mxu0
    %v367 = vpop.f32.mrb[0].mxu0
    %v368 = vadd.f32 %v240, %v367
    %v369 = vpop.f32.mrb[0].mxu0
    %370 = vmatprep.mubr.bf16.mxu0 0
    %371 = vmatmul.mubr.bf16.gmra.mrb[0].mxu0 %v215
    %v372 = vpop.f32.mrb[0].mxu0
    %v373 = vadd.f32 %v240, %v372
    %v374 = vpop.f32.mrb[0].mxu0
    %v375 = vpop.f32.mrb[0].mxu0
    %v376 = vadd.f32 %v240, %v375
    %v377 = vpop.f32.mrb[0].mxu0
    %378 = vmatprep.mubr.bf16.mxu0 0
    %379 = vmatmul.mubr.bf16.gmra.mrb[0].mxu0 %v216
    %v380 = vpop.f32.mrb[0].mxu0
    %v381 = vadd.f32 %v240, %v380
    %v382 = vpop.f32.mrb[0].mxu0
    %v383 = vpop.f32.mrb[0].mxu0
    %v384 = vadd.f32 %v240, %v383
    %v385 = vpop.f32.mrb[0].mxu0
    %386 = vdwg.mxu0
    %v387 = vmax.f32 %v325, 0.0
    %v388 = vmax.f32 %v328, 0.0
    %v389 = vmax.f32 %v333, 0.0
    %v390 = vmax.f32 %v336, 0.0
    %v391 = vmax.f32 %v341, 0.0
    %v392 = vmax.f32 %v344, 0.0
    %v393 = vmax.f32 %v349, 0.0
    %v394 = vmax.f32 %v352, 0.0
    %v395 = vmax.f32 %v357, 0.0
    %v396 = vmax.f32 %v360, 0.0
    %v397 = vmax.f32 %v365, 0.0
    %v398 = vmax.f32 %v368, 0.0
    %v399 = vmax.f32 %v373, 0.0
    %v400 = vmax.f32 %v376, 0.0
    %v401 = vmax.f32 %v381, 0.0
    %v402 = vmax.f32 %v384, 0.0
    %v403 = vpack.c.bf16 %v388, %v387
    %v404 = vpack.c.bf16 %v390, %v389
    %v405 = vpack.c.bf16 %v392, %v391
    %v406 = vpack.c.bf16 %v394, %v393
    %v407 = vpack.c.bf16 %v396, %v395
    %v408 = vpack.c.bf16 %v398, %v397
    %v409 = vpack.c.bf16 %v400, %v399
    %v410 = vpack.c.bf16 %v402, %v401
    %s411 = scalar_lea.vmem [#allocation2], 128
    %v412 = vld [vmem:[%s411] sm:$0xf]
    %v413 = vld [vmem:[%s411 + $0x4] sm:$0xf]
    %v414 = vld [vmem:[%s411 + $0x8] sm:$0xf]
    %v415 = vld [vmem:[%s411 + $0xc] sm:$0xf]
    %v416 = vld [vmem:[%s411 + $0x10] sm:$0xf]
    %v417 = vld [vmem:[%s411 + $0x14] sm:$0xf]
    %v418 = vld [vmem:[%s411 + $0x18] sm:$0xf]
    %v419 = vld [vmem:[%s411 + $0x1c] sm:$0xf]
    %v420 = vld [vmem:[%s411 + $0x20] sm:$0xf]
    %v421 = vld [vmem:[%s411 + $0x24] sm:$0xf]
    %v422 = vld [vmem:[%s411 + $0x28] sm:$0xf]
    %v423 = vld [vmem:[%s411 + $0x2c] sm:$0xf]
    %v424 = vld [vmem:[%s411 + $0x30] sm:$0xf]
    %v425 = vld [vmem:[%s411 + $0x34] sm:$0xf]
    %v426 = vld [vmem:[%s411 + $0x38] sm:$0xf]
    %v427 = vld [vmem:[%s411 + $0x3c] sm:$0xf]
    %s428 = scalar_lea.vmem %s2, 2
    %v429 = vld [vmem:[%s428] sm:$0x1]
    %v431 = vlaneseq
    %v432 = vshrl.u32 %v431, 7
    %v433 = vsub.s32 0, %v432
    %v434 = vrot.slane %v429, %v433
    %v452 = vunpack.c.l.b16 %v412
    %v453 = vunpack.c.l.b16 %v413
    %v454 = vunpack.c.l.b16 %v414
    %v455 = vunpack.c.l.b16 %v415
    %v456 = vunpack.c.l.b16 %v416
    %v457 = vunpack.c.l.b16 %v417
    %v458 = vunpack.c.l.b16 %v418
    %v459 = vunpack.c.l.b16 %v419
    %v460 = vunpack.c.l.b16 %v420
    %v461 = vunpack.c.l.b16 %v421
    %v462 = vunpack.c.l.b16 %v422
    %v463 = vunpack.c.l.b16 %v423
    %v464 = vunpack.c.l.b16 %v424
    %v465 = vunpack.c.l.b16 %v425
    %v466 = vunpack.c.l.b16 %v426
    %v467 = vunpack.c.l.b16 %v427
    %v468 = vpack.c.b16 %v453, %v452
    %v469 = vpack.c.b16 %v455, %v454
    %v470 = vpack.c.b16 %v457, %v456
    %v471 = vpack.c.b16 %v459, %v458
    %v472 = vpack.c.b16 %v461, %v460
    %v473 = vpack.c.b16 %v463, %v462
    %v474 = vpack.c.b16 %v465, %v464
    %v475 = vpack.c.b16 %v467, %v466
    %484 = vmatprep.subr.bf16.mxu0 0
    %485 = vmatpush1.bf16.msra.mxu0 %v468
    %486 = vmatprep.subr.bf16.mxu0 0
    %487 = vmatpush1.bf16.msra.mxu0 %v469
    %488 = vmatprep.subr.bf16.mxu0 0
    %489 = vmatpush1.bf16.msra.mxu0 %v470
    %490 = vmatprep.subr.bf16.mxu0 0
    %491 = vmatpush1.bf16.msra.mxu0 %v471
    %492 = vmatprep.subr.bf16.mxu0 0
    %493 = vmatpush1.bf16.msra.mxu0 %v472
    %494 = vmatprep.subr.bf16.mxu0 0
    %495 = vmatpush1.bf16.msra.mxu0 %v473
    %496 = vmatprep.subr.bf16.mxu0 0
    %497 = vmatpush1.bf16.msra.mxu0 %v474
    %498 = vmatprep.subr.bf16.mxu0 0
    %499 = vmatpush1.bf16.msra.mxu0 %v475
    %500 = vmatprep.subr.bf16.mxu0 0
    %501 = vmatpush1.bf16.msra.mxu0 0
    %502 = vmatprep.subr.bf16.mxu0 0
    %503 = vmatpush1.bf16.msra.mxu0 0
    %504 = vmatprep.subr.bf16.mxu0 0
    %505 = vmatpush1.bf16.msra.mxu0 0
    %506 = vmatprep.subr.bf16.mxu0 0
    %507 = vmatpush1.bf16.msra.mxu0 0
    %508 = vmatprep.subr.bf16.mxu0 0
    %509 = vmatpush1.bf16.msra.mxu0 0
    %510 = vmatprep.subr.bf16.mxu0 0
    %511 = vmatpush1.bf16.msra.mxu0 0
    %512 = vmatprep.subr.bf16.mxu0 0
    %513 = vmatpush1.bf16.msra.mxu0 0
    %514 = vmatprep.subr.bf16.mxu0 0
    %515 = vmatpush1.bf16.msra.mxu0 0
    %516 = vmatprep.mubr.bf16.mxu0 0
    %517 = vmatmul.mubr.bf16.gmra.mrb[0].mxu0 %v403
    %v518 = vpop.f32.mrb[0].mxu0
    %v519 = vadd.f32 %v434, %v518
    %v520 = vpop.f32.mrb[0].mxu0
    %v521 = vpop.f32.mrb[0].mxu0
    %v522 = vadd.f32 %v434, %v521
    %v523 = vpop.f32.mrb[0].mxu0
    %524 = vmatprep.mubr.bf16.mxu0 0
    %525 = vmatmul.mubr.bf16.gmra.mrb[0].mxu0 %v404
    %v526 = vpop.f32.mrb[0].mxu0
    %v527 = vadd.f32 %v434, %v526
    %v528 = vpop.f32.mrb[0].mxu0
    %v529 = vpop.f32.mrb[0].mxu0
    %v530 = vadd.f32 %v434, %v529
    %v531 = vpop.f32.mrb[0].mxu0
    %532 = vmatprep.mubr.bf16.mxu0 0
    %533 = vmatmul.mubr.bf16.gmra.mrb[0].mxu0 %v405
    %v534 = vpop.f32.mrb[0].mxu0
    %v535 = vadd.f32 %v434, %v534
    %v536 = vpop.f32.mrb[0].mxu0
    %v537 = vpop.f32.mrb[0].mxu0
    %v538 = vadd.f32 %v434, %v537
    %v539 = vpop.f32.mrb[0].mxu0
    %540 = vmatprep.mubr.bf16.mxu0 0
    %541 = vmatmul.mubr.bf16.gmra.mrb[0].mxu0 %v406
    %v542 = vpop.f32.mrb[0].mxu0
    %v543 = vadd.f32 %v434, %v542
    %v544 = vpop.f32.mrb[0].mxu0
    %v545 = vpop.f32.mrb[0].mxu0
    %v546 = vadd.f32 %v434, %v545
    %v547 = vpop.f32.mrb[0].mxu0
    %548 = vmatprep.mubr.bf16.mxu0 0
    %549 = vmatmul.mubr.bf16.gmra.mrb[0].mxu0 %v407
    %v550 = vpop.f32.mrb[0].mxu0
    %v551 = vadd.f32 %v434, %v550
    %v552 = vpop.f32.mrb[0].mxu0
    %v553 = vpop.f32.mrb[0].mxu0
    %v554 = vadd.f32 %v434, %v553
    %v555 = vpop.f32.mrb[0].mxu0
    %556 = vmatprep.mubr.bf16.mxu0 0
    %557 = vmatmul.mubr.bf16.gmra.mrb[0].mxu0 %v408
    %v558 = vpop.f32.mrb[0].mxu0
    %v559 = vadd.f32 %v434, %v558
    %v560 = vpop.f32.mrb[0].mxu0
    %v561 = vpop.f32.mrb[0].mxu0
    %v562 = vadd.f32 %v434, %v561
    %v563 = vpop.f32.mrb[0].mxu0
    %564 = vmatprep.mubr.bf16.mxu0 0
    %565 = vmatmul.mubr.bf16.gmra.mrb[0].mxu0 %v409
    %v566 = vpop.f32.mrb[0].mxu0
    %v567 = vadd.f32 %v434, %v566
    %v568 = vpop.f32.mrb[0].mxu0
    %v569 = vpop.f32.mrb[0].mxu0
    %v570 = vadd.f32 %v434, %v569
    %v571 = vpop.f32.mrb[0].mxu0
    %572 = vmatprep.mubr.bf16.mxu0 0
    %573 = vmatmul.mubr.bf16.gmra.mrb[0].mxu0 %v410
    %v574 = vpop.f32.mrb[0].mxu0
    %v575 = vadd.f32 %v434, %v574
    %v576 = vpop.f32.mrb[0].mxu0
    %v577 = vpop.f32.mrb[0].mxu0
    %v578 = vadd.f32 %v434, %v577
    %v579 = vpop.f32.mrb[0].mxu0
    %580 = vdwg.mxu0
    %581 = vxpose.xlu0.b32.start [1/16] %v519, 128
    %582 = vxpose.xlu0.b32.cont [2/16] %v522, 128
    %583 = vxpose.xlu0.b32.cont [3/16] %v527, 128
    %584 = vxpose.xlu0.b32.cont [4/16] %v530, 128
    %585 = vxpose.xlu0.b32.cont [5/16] %v535, 128
    %586 = vxpose.xlu0.b32.cont [6/16] %v538, 128
    %587 = vxpose.xlu0.b32.cont [7/16] %v543, 128
    %588 = vxpose.xlu0.b32.cont [8/16] %v546, 128
    %589 = vxpose.xlu0.b32.cont [9/16] %v551, 128
    %590 = vxpose.xlu0.b32.cont [10/16] %v554, 128
    %591 = vxpose.xlu0.b32.cont [11/16] %v559, 128
    %592 = vxpose.xlu0.b32.cont [12/16] %v562, 128
    %593 = vxpose.xlu0.b32.cont [13/16] %v567, 128
    %594 = vxpose.xlu0.b32.cont [14/16] %v570, 128
    %595 = vxpose.xlu0.b32.cont [15/16] %v575, 128
    %596 = vxpose.xlu0.b32.end [16/16] %v578, 128
    %v597 = vpop.trf.xlu0
    %v598 = vpop.trf.xlu0
    %v599 = vpop.trf.xlu0
    %v600 = vpop.trf.xlu0
    %v601 = vpop.trf.xlu0
    %v602 = vpop.trf.xlu0
    %v603 = vpop.trf.xlu0
    %v604 = vpop.trf.xlu0
    %v605 = vpop.trf.xlu0
    %v606 = vpop.trf.xlu0
    %v607 = vpop.trf.xlu0
    %v608 = vpop.trf.xlu0
    %v609 = vpop.trf.xlu0
    %v610 = vpop.trf.xlu0
    %v611 = vpop.trf.xlu0
    %v612 = vpop.trf.xlu0
    %v613 = vsub.f32 0.0, %v597
    %v614 = vmul.f32 %v613, 1.442695
    %v615 = vpow.pop %v614
    %v616 = vadd.f32 %v615, 1.0
    %v617 = vrcp.pop %v616
    %618 = vst [vmem:[%s3] sm:$0x1] %v617
    // Predicated region
    $region18: #{mlp_forward.1} parent=1 // pred_check
      _
    $region19: #{mlp_forward.1} parent=1 // pred_check_branch
      %620 = sbr.rel (0) target = $region21
    $region20: #{mlp_forward.1} parent=1 // pred_region
      _
    $region21: #{mlp_forward.1} parent=1 // pred_fallthru
      _
    // Predicated region
    $region22: #{mlp_forward.1} parent=1 // pred_check
      _
    $region23: #{mlp_forward.1} parent=1 // pred_check_branch
      %622 = sbr.rel (0) target = $region25
    $region24: #{mlp_forward.1} parent=1 // pred_region
      _
    $region25: #{mlp_forward.1} parent=1 // pred_fallthru
      _
    %623 = vsyncpa [#allocation3], 1

</llo_original>
